<compile_context>
chip_gen: v6e
topology: v6e:2x2x1
jax: 0.10.0
libtpu: 0.0.40
codegen_flags: <defaults>
</compile_context>

<pallas_src>
import jax
import jax.numpy as jnp
from jax.experimental import pallas as pl
from jax.experimental.pallas import tpu as pltpu

BN_EPS = 1e-5
LANES = 128


def _round_up(x, m):
    return (x + m - 1) // m * m


def _slab_layout(features, neurons):
    """Sublane-aligned section offsets inside the packed parameter slab."""
    r_w1 = 0
    r_w2 = r_w1 + _round_up(features, 8)
    r_sm = r_w2 + _round_up(neurons, 8)
    rows = _round_up(r_sm + 5, 8)
    width = max(LANES, _round_up(max(neurons, 8), LANES))
    return r_w1, r_w2, r_sm, rows, width


def make_net_kernel(features, neurons):
    F, N = features, neurons
    r_w1, r_w2, r_sm, _, _ = _slab_layout(F, N)

    def net_kernel(x_ref, slab_ref, out_ref):
        x = x_ref[...].astype(jnp.float32)

        # ---- unpack the single packed parameter slab (static slices of the
        #      VMEM ref at 8-sublane-aligned section starts; no extra DMAs) ----
        w1     = slab_ref[r_w1:r_w1 + F, :N]        # [F, N]
        w2     = slab_ref[r_w2:r_w2 + N, :8]        # [N, 8]
        gamma  = slab_ref[r_sm + 0:r_sm + 1, :N]    # [1, N]
        beta   = slab_ref[r_sm + 1:r_sm + 2, :N]    # [1, N]
        b2     = slab_ref[r_sm + 2:r_sm + 3, :8]    # [1, 8]
        w3_row = slab_ref[r_sm + 3:r_sm + 4, :8]    # [1, 8]  (lin3 weight row)
        b3     = slab_ref[r_sm + 4:r_sm + 5, 0:1]   # [1, 1]

        # ---- lin1 (bias-free): BN batch-mean subtraction cancels b1 exactly ----
        h1 = jnp.dot(x, w1, preferred_element_type=jnp.float32)

        # ---- BatchNorm1d, training-mode batch stats, fused scale/shift ----
        mean    = jnp.mean(h1, axis=0, keepdims=True)
        mean_sq = jnp.mean(h1 * h1, axis=0, keepdims=True)
        var     = jnp.maximum(mean_sq - mean * mean, 0.0)   # clamp: no NaN rsqrt
        scale   = gamma * jax.lax.rsqrt(var + BN_EPS)
        shift   = beta - mean * scale
        hn      = h1 * scale + shift

        # ---- lin2 + relu: [B, N] @ [N, 8] + [1, 8] ----
        h2 = jnp.dot(hn, w2, preferred_element_type=jnp.float32) + b2
        h2 = jnp.maximum(h2, 0.0)

        # ---- lin3 + sigmoid on the VPU/XLU (avoid a third serial MXU op) ----
        h3 = jnp.sum(h2 * w3_row, axis=-1, keepdims=True) + b3
        out_ref[...] = jax.nn.sigmoid(h3)

    return net_kernel


def pack_params(params, features, neurons):
    """Pack every parameter into one lane-dense f32 slab (built once, host side)."""
    F, N = features, neurons
    r_w1, r_w2, r_sm, rows, width = _slab_layout(F, N)
    slab = jnp.zeros((rows, width), jnp.float32)
    slab = slab.at[r_w1:r_w1 + F, :N].set(params["w1"])
    slab = slab.at[r_w2:r_w2 + N, :8].set(params["w2"])
    slab = slab.at[r_sm + 0, :N].set(params["gamma"].reshape(-1))
    slab = slab.at[r_sm + 1, :N].set(params["beta"].reshape(-1))
    slab = slab.at[r_sm + 2, :8].set(params["b2"].reshape(-1))
    slab = slab.at[r_sm + 3, :8].set(params["w3"].reshape(-1))
    slab = slab.at[r_sm + 4, 0].set(params["b3"].reshape(-1)[0])
    return slab


def net_forward(x, slab, features, neurons):
    B = x.shape[0]
    F, N = features, neurons
    vmem = pl.BlockSpec(memory_space=pltpu.MemorySpace.VMEM)
    cost = pl.CostEstimate(
        flops=2 * B * F * N + 2 * B * N * 8 + 2 * B * 8 + 10 * B * N,
        transcendentals=B + N,                       # sigmoid + rsqrt
        bytes_accessed=(x.size + slab.size + B) * 4,
    )
    return pl.pallas_call(
        make_net_kernel(F, N),
        out_shape=jax.ShapeDtypeStruct((B, 1), jnp.float32),
        in_specs=[vmem, vmem],
        out_specs=vmem,
        cost_estimate=cost,
    )(x, slab)


def net_reference(x, params):
    """Pure-JAX reference matching the PyTorch module (keeps b1)."""
    h1 = x @ params["w1"] + params["b1"]
    mean = jnp.mean(h1, axis=0, keepdims=True)
    var = jnp.mean((h1 - mean) ** 2, axis=0, keepdims=True)
    hn = (h1 - mean) * jax.lax.rsqrt(var + BN_EPS)
    hn = hn * params["gamma"] + params["beta"]
    h2 = jnp.maximum(hn @ params["w2"] + params["b2"], 0.0)
    h3 = h2 @ params["w3"] + params["b3"]
    return jax.nn.sigmoid(h3)


def init_params(key, features, neurons):
    """Deterministic PyTorch-style init: U(-1/sqrt(fan_in), 1/sqrt(fan_in))."""
    def linear_init(key, fan_in, fan_out):
        kw, kb = jax.random.split(key)
        bound = 1.0 / jnp.sqrt(jnp.float32(fan_in))
        w = jax.random.uniform(kw, (fan_in, fan_out), jnp.float32, -bound, bound)
        b = jax.random.uniform(kb, (1, fan_out), jnp.float32, -bound, bound)
        return w, b

    k1, k2, k3 = jax.random.split(key, 3)
    w1, b1 = linear_init(k1, features, neurons)  # b1 kept for the reference;
    w2, b2 = linear_init(k2, neurons, 8)         # the kernel omits it (exact
    w3, b3 = linear_init(k3, 8, 1)               # cancellation by batch-mean).
    return {
        "w1": w1, "b1": b1,
        "gamma": jnp.ones((1, neurons), jnp.float32),   # BatchNorm1d affine
        "beta": jnp.zeros((1, neurons), jnp.float32),
        "w2": w2, "b2": b2,
        "w3": w3, "b3": b3,
    }


if __name__ == "__main__":
    features, neurons, batch = 32, 16, 8
    key = jax.random.PRNGKey(0)
    k_params, k_x = jax.random.split(key)

    params = init_params(k_params, features, neurons)
    x = jax.random.normal(k_x, (batch, features), jnp.float32)

    slab = pack_params(params, features, neurons)   # built once, outside kernel
    out = net_forward(x, slab, features, neurons)
    out = jax.block_until_ready(out)

    ref = net_reference(x, params)

    assert out.shape == (batch, 1)
    assert bool(jnp.all(jnp.isfinite(out)))
    assert bool(jnp.all((out >= 0.0) & (out <= 1.0)))
    assert bool(jnp.allclose(out, ref, rtol=1e-4, atol=1e-5))
    print("KERNEL_OK")
</pallas_src>

<mosaic_0001>
module attributes {stable_mosaic.version = 11 : i64} {
  func.func @net_kernel(%arg0: memref<8x32xf32, #tpu.memory_space<vmem>>, %arg1: memref<56x128xf32, #tpu.memory_space<vmem>>, %arg2: memref<8x1xf32, #tpu.memory_space<vmem>>) attributes {dimension_semantics = [], scalar_prefetch = 0 : i64, scratch_operands = 0 : i64, tpu.core_type = #tpu.core_type<tc>} {
    %c0 = arith.constant 0 : index
    %c0_0 = arith.constant 0 : index
    %0 = vector.load %arg0[%c0, %c0_0] : memref<8x32xf32, #tpu.memory_space<vmem>>, vector<8x32xf32>
    %c0_1 = arith.constant 0 : index
    %c0_2 = arith.constant 0 : index
    %1 = vector.load %arg1[%c0_1, %c0_2] : memref<56x128xf32, #tpu.memory_space<vmem>>, vector<32x16xf32>
    %c32 = arith.constant 32 : index
    %c0_3 = arith.constant 0 : index
    %2 = vector.load %arg1[%c32, %c0_3] : memref<56x128xf32, #tpu.memory_space<vmem>>, vector<16x8xf32>
    %c48 = arith.constant 48 : index
    %c0_4 = arith.constant 0 : index
    %3 = vector.load %arg1[%c48, %c0_4] : memref<56x128xf32, #tpu.memory_space<vmem>>, vector<1x16xf32>
    %c49 = arith.constant 49 : index
    %c0_5 = arith.constant 0 : index
    %4 = vector.load %arg1[%c49, %c0_5] : memref<56x128xf32, #tpu.memory_space<vmem>>, vector<1x16xf32>
    %c50 = arith.constant 50 : index
    %c0_6 = arith.constant 0 : index
    %5 = vector.load %arg1[%c50, %c0_6] : memref<56x128xf32, #tpu.memory_space<vmem>>, vector<1x8xf32>
    %c51 = arith.constant 51 : index
    %c0_7 = arith.constant 0 : index
    %6 = vector.load %arg1[%c51, %c0_7] : memref<56x128xf32, #tpu.memory_space<vmem>>, vector<1x8xf32>
    %c52 = arith.constant 52 : index
    %c0_8 = arith.constant 0 : index
    %7 = vector.load %arg1[%c52, %c0_8] : memref<56x128xf32, #tpu.memory_space<vmem>>, vector<1x1xf32>
    %cst = arith.constant dense<0.000000e+00> : vector<8x16xf32>
    %8 = tpu.matmul %0, %1, %cst {dimension_numbers = #tpu.dot_dimension_numbers<[1], [0], [0], [1], [0, 0, 1, 1], [], []>} : vector<8x32xf32>, vector<32x16xf32>, vector<8x16xf32> -> vector<8x16xf32>
    %cst_9 = arith.constant dense<0.000000e+00> : vector<16xf32>
    %9 = vector.multi_reduction <add>, %8, %cst_9 [0] : vector<8x16xf32> to vector<16xf32>
    %10 = vector.shape_cast %9 : vector<16xf32> to vector<1x16xf32>
    %cst_10 = arith.constant 8.000000e+00 : f32
    %11 = vector.broadcast %cst_10 : f32 to vector<1x16xf32>
    %12 = arith.divf %10, %11 : vector<1x16xf32>
    %13 = arith.mulf %8, %8 : vector<8x16xf32>
    %cst_11 = arith.constant dense<0.000000e+00> : vector<16xf32>
    %14 = vector.multi_reduction <add>, %13, %cst_11 [0] : vector<8x16xf32> to vector<16xf32>
    %15 = vector.shape_cast %14 : vector<16xf32> to vector<1x16xf32>
    %cst_12 = arith.constant 8.000000e+00 : f32
    %16 = vector.broadcast %cst_12 : f32 to vector<1x16xf32>
    %17 = arith.divf %15, %16 : vector<1x16xf32>
    %18 = arith.mulf %12, %12 : vector<1x16xf32>
    %19 = arith.subf %17, %18 : vector<1x16xf32>
    %cst_13 = arith.constant 0.000000e+00 : f32
    %20 = vector.broadcast %cst_13 : f32 to vector<1x16xf32>
    %21 = arith.maximumf %19, %20 : vector<1x16xf32>
    %cst_14 = arith.constant 9.99999974E-6 : f32
    %22 = vector.broadcast %cst_14 : f32 to vector<1x16xf32>
    %23 = arith.addf %21, %22 : vector<1x16xf32>
    %24 = math.rsqrt %23 : vector<1x16xf32>
    %25 = arith.mulf %3, %24 : vector<1x16xf32>
    %26 = arith.mulf %12, %25 : vector<1x16xf32>
    %27 = arith.subf %4, %26 : vector<1x16xf32>
    %28 = vector.broadcast %25 : vector<1x16xf32> to vector<8x16xf32>
    %29 = arith.mulf %8, %28 : vector<8x16xf32>
    %30 = vector.broadcast %27 : vector<1x16xf32> to vector<8x16xf32>
    %31 = arith.addf %29, %30 : vector<8x16xf32>
    %cst_15 = arith.constant dense<0.000000e+00> : vector<8x8xf32>
    %32 = tpu.matmul %31, %2, %cst_15 {dimension_numbers = #tpu.dot_dimension_numbers<[1], [0], [0], [1], [0, 0, 1, 1], [], []>} : vector<8x16xf32>, vector<16x8xf32>, vector<8x8xf32> -> vector<8x8xf32>
    %33 = vector.broadcast %5 : vector<1x8xf32> to vector<8x8xf32>
    %34 = arith.addf %32, %33 : vector<8x8xf32>
    %cst_16 = arith.constant 0.000000e+00 : f32
    %35 = vector.broadcast %cst_16 : f32 to vector<8x8xf32>
    %36 = arith.maximumf %34, %35 : vector<8x8xf32>
    %37 = vector.broadcast %6 : vector<1x8xf32> to vector<8x8xf32>
    %38 = arith.mulf %36, %37 : vector<8x8xf32>
    %cst_17 = arith.constant dense<0.000000e+00> : vector<8xf32>
    %39 = vector.multi_reduction <add>, %38, %cst_17 [1] : vector<8x8xf32> to vector<8xf32>
    %40 = vector.shape_cast %39 : vector<8xf32> to vector<8x1xf32>
    %41 = vector.broadcast %7 : vector<1x1xf32> to vector<8x1xf32>
    %42 = arith.addf %40, %41 : vector<8x1xf32>
    %43 = arith.negf %42 : vector<8x1xf32>
    %44 = math.exp %43 : vector<8x1xf32>
    %cst_18 = arith.constant 1.000000e+00 : f32
    %45 = vector.broadcast %cst_18 : f32 to vector<8x1xf32>
    %46 = arith.addf %45, %44 : vector<8x1xf32>
    %47 = arith.divf %45, %46 : vector<8x1xf32>
    %c0_19 = arith.constant 0 : index
    %c0_20 = arith.constant 0 : index
    %48 = vector.load %arg2[%c0_19, %c0_20] : memref<8x1xf32, #tpu.memory_space<vmem>>, vector<8x1xf32>
    tpu.vector_store %arg2[%c0_19, %c0_20], %47 {strides = array<i32>} : memref<8x1xf32, #tpu.memory_space<vmem>>, vector<8x1xf32>,
    return
  }
}

</mosaic_0001>

<llo_original>
// kernel: tpu_custom_call.1
$region0: #{tpu_custom_call.1}
  #allocation0 [shape = 'u32[]', space=smem, size = 0x4, offset = 0x4, fixed_abs, tag = 'smem constant byte address 0x4 - core index']
  #allocation1 [shape = 'u32[144,128]{1,0:T(1,128)}', space=vmem, size = 0x12000, scoped, tag = 'internal scratch']
  %s0 = inlined_call_operand.hbm [shape: f32[8,32], index: 0, kind: input, shape index: {}]
  %s1 = inlined_call_operand.hbm [shape: f32[56,128], index: 1, kind: input, shape index: {}]
  %s2 = inlined_call_operand.vmem [shape: f32[8,1], index: 2, kind: output, shape index: {}]
  %s3 = sld [smem:[#allocation0]]
  $region26: #{tpu_custom_call.1} parent=0
    _
  %s5 = ssub.s32 1, %s3
  %s6 = scalar_select 0, %s5, %s3
  $region1: #{tpu_custom_call.1} parent=0
    #allocation2 [shape = 'u8[4096]{0}', space=vmem, size = 0x1000, scoped, tag = 'input window, operand 0, single buffered']
    #allocation3 [shape = 's32[1]{0}', space=sflag, size = 0x4, scoped, tag = 'scoped memory for tpu_custom_call.1']
    #allocation4 [shape = 'u8[28672]{0}', space=vmem, size = 0x7000, scoped, tag = 'input window, operand 1, single buffered']
    #allocation5 [shape = 's32[1]{0}', space=sflag, size = 0x4, scoped, tag = 'scoped memory for tpu_custom_call.1']
    %7 = vsyncpa [#allocation3], 0
    %8 = vsyncpa [#allocation5], 0
    // Predicated region
    $region2: #{tpu_custom_call.1} parent=1 // pred_check
      _
    $region3: #{tpu_custom_call.1} parent=1 // pred_check_branch
      %10 = sbr.rel (0) target = $region5
    $region4: #{tpu_custom_call.1} parent=1 // pred_region
      %s12 = ssub.s32 128, 128
      %13 = vsyncadd [#allocation3], %s12
      %s15 = sshll.u32 [#allocation2], 4
      %s16 = int_to_ptr.vmem [resolvable:$true] %s15
      %18 = dma.hbm_to_vmem [thread:$0]  %s0, 128, %s16, [#allocation3]
    $region5: #{tpu_custom_call.1} parent=1 // pred_fallthru
      _
    // Predicated region
    $region6: #{tpu_custom_call.1} parent=1 // pred_check
      _
    $region7: #{tpu_custom_call.1} parent=1 // pred_check_branch
      %20 = sbr.rel (0) target = $region9
    $region8: #{tpu_custom_call.1} parent=1 // pred_region
      %s22 = ssub.s32 896, 896
      %23 = vsyncadd [#allocation5], %s22
      %s24 = sshll.u32 [#allocation4], 4
      %s25 = int_to_ptr.vmem [resolvable:$true] %s24
      %30 = dma.hbm_to_vmem [thread:$0]  %s1, 896, %s25, [#allocation5], 128, 128, 8
    $region9: #{tpu_custom_call.1} parent=1 // pred_fallthru
      _
    // Predicated region
    $region10: #{tpu_custom_call.1} parent=1 // pred_check
      _
    $region11: #{tpu_custom_call.1} parent=1 // pred_check_branch
      %32 = sbr.rel (0) target = $region13
    $region12: #{tpu_custom_call.1} parent=1 // pred_region
      %33 = dma.done [#allocation3], 128
    $region13: #{tpu_custom_call.1} parent=1 // pred_fallthru
      _
    // Predicated region
    $region14: #{tpu_custom_call.1} parent=1 // pred_check
      _
    $region15: #{tpu_custom_call.1} parent=1 // pred_check_branch
      %35 = sbr.rel (0) target = $region17
    $region16: #{tpu_custom_call.1} parent=1 // pred_region
      %36 = dma.done [#allocation5], 896
    $region17: #{tpu_custom_call.1} parent=1 // pred_fallthru
      _
    %v37 = vld [vmem:[#allocation2] sm:$0xff]
    %v38 = vld [vmem:[#allocation4] sm:$0xff]
    %v39 = vld [vmem:[#allocation4 + $0x8] sm:$0xff]
    %v40 = vld [vmem:[#allocation4 + $0x10] sm:$0xff]
    %v41 = vld [vmem:[#allocation4 + $0x18] sm:$0xff]
    %v42 = vld [vmem:[#allocation4 + $0x20] sm:$0xff]
    %v43 = vld [vmem:[#allocation4 + $0x28] sm:$0xff]
    %v44 = vld [vmem:[#allocation4 + $0x30] sm:$0x1]
    %v45 = vld [vmem:[#allocation4 + $0x31] sm:$0x1]
    %v46 = vld [vmem:[#allocation4 + $0x32] sm:$0x1]
    %v47 = vld [vmem:[#allocation4 + $0x33] sm:$0x1]
    %v48 = vld [vmem:[#allocation4 + $0x34] sm:$0x1]
    %vm49 = vcmask 261120
    %v51 = vsel %vm49, %v37, 0
    %53 = vmatprep.subr.mxu0 0.0
    %54 = vmatpush1.msra.mxu0 0.0
    %55 = vmatprep.subr.mxu0 0.0
    %56 = vmatpush1.msra.mxu0 0.0
    %57 = vmatprep.subr.mxu0 0.0
    %58 = vmatpush1.msra.mxu0 0.0
    %59 = vmatprep.subr.mxu0 0.0
    %60 = vmatpush1.msra.mxu0 0.0
    %61 = vmatprep.subr.mxu0 0.0
    %62 = vmatpush1.msra.mxu0 0.0
    %63 = vmatprep.subr.mxu0 0.0
    %64 = vmatpush1.msra.mxu0 0.0
    %65 = vmatprep.subr.mxu0 0.0
    %66 = vmatpush1.msra.mxu0 0.0
    %67 = vmatprep.subr.mxu0 0.0
    %68 = vmatpush1.msra.mxu0 0.0
    %69 = vmatprep.subr.mxu0 0.0
    %70 = vmatpush1.msra.mxu0 0.0
    %71 = vmatprep.subr.mxu0 0.0
    %72 = vmatpush1.msra.mxu0 0.0
    %73 = vmatprep.subr.mxu0 0.0
    %74 = vmatpush1.msra.mxu0 0.0
    %75 = vmatprep.subr.mxu0 0.0
    %76 = vmatpush1.msra.mxu0 0.0
    %77 = vmatprep.subr.mxu0 0.0
    %78 = vmatpush1.msra.mxu0 %v41
    %79 = vmatprep.subr.mxu0 0.0
    %80 = vmatpush1.msra.mxu0 %v40
    %81 = vmatprep.subr.mxu0 0.0
    %82 = vmatpush1.msra.mxu0 %v39
    %83 = vmatprep.subr.mxu0 0.0
    %84 = vmatpush1.msra.mxu0 %v38
    %85 = vmatprep.subr.mxu0 0.0
    %86 = vmatpush2.msra.mxu0 0.0
    %87 = vmatprep.subr.mxu0 0.0
    %88 = vmatpush2.msra.mxu0 0.0
    %89 = vmatprep.subr.mxu0 0.0
    %90 = vmatpush2.msra.mxu0 0.0
    %91 = vmatprep.subr.mxu0 0.0
    %92 = vmatpush2.msra.mxu0 0.0
    %93 = vmatprep.subr.mxu0 0.0
    %94 = vmatpush2.msra.mxu0 0.0
    %95 = vmatprep.subr.mxu0 0.0
    %96 = vmatpush2.msra.mxu0 0.0
    %97 = vmatprep.subr.mxu0 0.0
    %98 = vmatpush2.msra.mxu0 0.0
    %99 = vmatprep.subr.mxu0 0.0
    %100 = vmatpush2.msra.mxu0 0.0
    %101 = vmatprep.subr.mxu0 0.0
    %102 = vmatpush2.msra.mxu0 0.0
    %103 = vmatprep.subr.mxu0 0.0
    %104 = vmatpush2.msra.mxu0 0.0
    %105 = vmatprep.subr.mxu0 0.0
    %106 = vmatpush2.msra.mxu0 0.0
    %107 = vmatprep.subr.mxu0 0.0
    %108 = vmatpush2.msra.mxu0 0.0
    %109 = vmatprep.subr.mxu0 0.0
    %110 = vmatpush2.msra.mxu0 0.0
    %111 = vmatprep.subr.mxu0 0.0
    %112 = vmatpush2.msra.mxu0 0.0
    %113 = vmatprep.subr.mxu0 0.0
    %114 = vmatpush2.msra.mxu0 0.0
    %115 = vmatprep.subr.mxu0 0.0
    %116 = vmatpush2.msra.mxu0 0.0
    %117 = vmatprep.mubr.f32.mxu0 0.0
    %118 = vmatmul.mubr.f32.gmra.mxu0 %v51
    %v119 = vpop.f32.mrf.mxu0
    %v120 = vadd.f32 0.0, %v119
    %v121 = vpop.f32.mrf.mxu0
    %122 = vdwg.mxu0
    %vm123 = vcmask 130048
    %v124 = vsel %vm123, %v120, 0.0
    %v125 = vrot.slane %v124, 4
    %v126 = vadd.f32 %v124, %v125
    %v127 = vrot.slane %v126, 2
    %v128 = vadd.f32 %v126, %v127
    %v129 = vrot.slane %v128, 1
    %v130 = vadd.f32 %v128, %v129
    %v131 = vrcp.pop 8.0
    %v132 = vmul.f32 %v130, %v131
    %v133 = vmul.f32 %v120, %v120
    %v134 = vsel %vm123, %v133, 0.0
    %v135 = vrot.slane %v134, 4
    %v136 = vadd.f32 %v134, %v135
    %v137 = vrot.slane %v136, 2
    %v138 = vadd.f32 %v136, %v137
    %v139 = vrot.slane %v138, 1
    %v140 = vadd.f32 %v138, %v139
    %v141 = vmul.f32 %v140, %v131
    %v142 = vmul.f32 %v132, %v132
    %v143 = vsub.f32 %v141, %v142
    %v144 = vmax.f32 %v143, 0.0
    %v145 = vadd.f32 %v144, 1e-05
    %v146 = vrsqrt.pop %v145
    %v147 = vmul.f32 %v44, %v146
    %v148 = vmul.f32 %v132, %v147
    %v149 = vsub.f32 %v45, %v148
    %v150 = vlaneseq
    %v151 = vshrl.u32 %v150, 7
    %v152 = vsub.s32 0, %v151
    %v153 = vrot.slane %v147, %v152
    %v154 = vmul.f32 %v120, %v153
    %v155 = vlaneseq
    %v156 = vshrl.u32 %v155, 7
    %v157 = vsub.s32 0, %v156
    %v158 = vrot.slane %v149, %v157
    %v159 = vadd.f32 %v154, %v158
    %v160 = vlaneseq
    %v161 = vshrl.u32 %v160, 7
    %v162 = vsub.s32 0, %v161
    %v163 = vrot.slane %v46, %v162
    %v165 = vsel %vm123, %v159, 0
    %167 = vmatprep.subr.mxu0 0.0
    %168 = vmatpush1.msra.mxu0 0.0
    %169 = vmatprep.subr.mxu0 0.0
    %170 = vmatpush1.msra.mxu0 0.0
    %171 = vmatprep.subr.mxu0 0.0
    %172 = vmatpush1.msra.mxu0 0.0
    %173 = vmatprep.subr.mxu0 0.0
    %174 = vmatpush1.msra.mxu0 0.0
    %175 = vmatprep.subr.mxu0 0.0
    %176 = vmatpush1.msra.mxu0 0.0
    %177 = vmatprep.subr.mxu0 0.0
    %178 = vmatpush1.msra.mxu0 0.0
    %179 = vmatprep.subr.mxu0 0.0
    %180 = vmatpush1.msra.mxu0 0.0
    %181 = vmatprep.subr.mxu0 0.0
    %182 = vmatpush1.msra.mxu0 0.0
    %183 = vmatprep.subr.mxu0 0.0
    %184 = vmatpush1.msra.mxu0 0.0
    %185 = vmatprep.subr.mxu0 0.0
    %186 = vmatpush1.msra.mxu0 0.0
    %187 = vmatprep.subr.mxu0 0.0
    %188 = vmatpush1.msra.mxu0 0.0
    %189 = vmatprep.subr.mxu0 0.0
    %190 = vmatpush1.msra.mxu0 0.0
    %191 = vmatprep.subr.mxu0 0.0
    %192 = vmatpush1.msra.mxu0 0.0
    %193 = vmatprep.subr.mxu0 0.0
    %194 = vmatpush1.msra.mxu0 0.0
    %195 = vmatprep.subr.mxu0 0.0
    %196 = vmatpush1.msra.mxu0 %v43
    %197 = vmatprep.subr.mxu0 0.0
    %198 = vmatpush1.msra.mxu0 %v42
    %199 = vmatprep.subr.mxu0 0.0
    %200 = vmatpush2.msra.mxu0 0.0
    %201 = vmatprep.subr.mxu0 0.0
    %202 = vmatpush2.msra.mxu0 0.0
    %203 = vmatprep.subr.mxu0 0.0
    %204 = vmatpush2.msra.mxu0 0.0
    %205 = vmatprep.subr.mxu0 0.0
    %206 = vmatpush2.msra.mxu0 0.0
    %207 = vmatprep.subr.mxu0 0.0
    %208 = vmatpush2.msra.mxu0 0.0
    %209 = vmatprep.subr.mxu0 0.0
    %210 = vmatpush2.msra.mxu0 0.0
    %211 = vmatprep.subr.mxu0 0.0
    %212 = vmatpush2.msra.mxu0 0.0
    %213 = vmatprep.subr.mxu0 0.0
    %214 = vmatpush2.msra.mxu0 0.0
    %215 = vmatprep.subr.mxu0 0.0
    %216 = vmatpush2.msra.mxu0 0.0
    %217 = vmatprep.subr.mxu0 0.0
    %218 = vmatpush2.msra.mxu0 0.0
    %219 = vmatprep.subr.mxu0 0.0
    %220 = vmatpush2.msra.mxu0 0.0
    %221 = vmatprep.subr.mxu0 0.0
    %222 = vmatpush2.msra.mxu0 0.0
    %223 = vmatprep.subr.mxu0 0.0
    %224 = vmatpush2.msra.mxu0 0.0
    %225 = vmatprep.subr.mxu0 0.0
    %226 = vmatpush2.msra.mxu0 0.0
    %227 = vmatprep.subr.mxu0 0.0
    %228 = vmatpush2.msra.mxu0 0.0
    %229 = vmatprep.subr.mxu0 0.0
    %230 = vmatpush2.msra.mxu0 0.0
    %231 = vmatprep.mubr.f32.mxu0 0.0
    %232 = vmatmul.mubr.f32.gmra.mxu0 %v165
    %v233 = vpop.f32.mrf.mxu0
    %v234 = vadd.f32 %v163, %v233
    %v235 = vpop.f32.mrf.mxu0
    %236 = vdwg.mxu0
    %v237 = vmax.f32 %v234, 0.0
    %v238 = vlaneseq
    %v239 = vshrl.u32 %v238, 7
    %v240 = vsub.s32 0, %v239
    %v241 = vrot.slane %v47, %v240
    %v242 = vmul.f32 %v237, %v241
    %vm243 = vcmask 64512
    %v244 = vsel %vm243, %v242, 0.0
    %245 = vadd.xlane.f32.xlu0 %v244
    %v246 = vpop.xlane.xlu0 %245
    %v247 = vlaneseq
    %v248 = vshrl.u32 %v247, 7
    %v249 = vsub.s32 0, %v248
    %v250 = vrot.slane %v48, %v249
    %v251 = vadd.f32 %v246, %v250
    %v252 = vxor.u32 %v251, 2147483648
    %v253 = vmul.f32 %v252, 1.442695
    %v254 = vpow.pop %v253
    %v255 = vadd.f32 %v254, 1.0
    %v256 = vrcp.pop %v255
    %v257 = vmul.f32 1.0, %v256
    %vm258 = vcmask 7168
    %259 = vst.msk [vmem:[%s2] sm:$0xff] %vm258, %v257
    // Predicated region
    $region18: #{tpu_custom_call.1} parent=1 // pred_check
      _
    $region19: #{tpu_custom_call.1} parent=1 // pred_check_branch
      %261 = sbr.rel (0) target = $region21
    $region20: #{tpu_custom_call.1} parent=1 // pred_region
      _
    $region21: #{tpu_custom_call.1} parent=1 // pred_fallthru
      _
    // Predicated region
    $region22: #{tpu_custom_call.1} parent=1 // pred_check
      _
    $region23: #{tpu_custom_call.1} parent=1 // pred_check_branch
      %263 = sbr.rel (0) target = $region25
    $region24: #{tpu_custom_call.1} parent=1 // pred_region
      _
    $region25: #{tpu_custom_call.1} parent=1 // pred_fallthru
      _
    %264 = vsyncpa [#allocation3], 1
    %265 = vsyncpa [#allocation5], 1

</llo_original>
